<compile_context>
chip_gen: v7x
topology: tpu7x:2x2x1
jax: 0.10.0
libtpu: 0.0.40
codegen_flags: <defaults>
</compile_context>

<pallas_src>
import functools

import jax
import jax.numpy as jnp
from jax import lax
from jax.experimental import pallas as pl
from jax.experimental.pallas import tpu as pltpu

# --- small GPT-2-like config ---
BATCH = 2
SEQ = 8
EMBED = 32
NUM_HEADS = 4
HEAD_DIM = EMBED // NUM_HEADS
MASKED_BIAS = -10000.0


def gpt2_attn_head_kernel(x_ref, wq_ref, wk_ref, wv_ref, bq_ref, bk_ref, bv_ref,
                          wp_ref, bp_ref, o_ref, acc_ref, *, num_heads, head_dim):
    """One (batch, head) grid step.

    Per-head Q/K/V projection + causal softmax attention + this head's slice
    of the output projection, accumulated across the head grid axis.
    """
    h = pl.program_id(1)

    @pl.when(h == 0)
    def _():
        acc_ref[...] = jnp.zeros_like(acc_ref)

    x = x_ref[0]                                                  # (S, E)
    scale = 1.0 / (float(head_dim) ** 0.5)

    # Per-head projections against column blocks of c_attn (no (B*S, 3E)
    # intermediate, no sub-vreg lane slicing).  1/sqrt(D) folded into q.
    # TODO(synk): at real GPT-2 shapes cast the MXU operands (q/k/v and p) to
    # bf16 on v6e/v7x (keep f32 softmax statistics and f32 accumulation); kept
    # f32 here for bit-level closeness at toy sizes / v5e VPU friendliness.
    q = (jnp.dot(x, wq_ref[0], preferred_element_type=jnp.float32)
         + bq_ref[0]) * scale                                     # (S, D)
    k = jnp.dot(x, wk_ref[0], preferred_element_type=jnp.float32) + bk_ref[0]
    v = jnp.dot(x, wv_ref[0], preferred_element_type=jnp.float32) + bv_ref[0]

    # Scores: contract the D axis of q and k directly (no explicit k.T temp).
    s = lax.dot_general(q, k, (((1,), (1,)), ((), ())),
                        preferred_element_type=jnp.float32)       # (S, S)

    # Causal mask.  (In a flash-tiled kv loop this mask only applies on the
    # diagonal tile and strictly-above-diagonal kv tiles are skipped.)
    sq = s.shape[0]
    row = lax.broadcasted_iota(jnp.int32, (sq, sq), 0)
    col = lax.broadcasted_iota(jnp.int32, (sq, sq), 1)
    s = jnp.where(col <= row, s, jnp.float32(MASKED_BIAS))

    # Numerically-stable softmax; denominator via EUP approx reciprocal.
    m = jnp.max(s, axis=-1, keepdims=True)
    p = jnp.exp(s - m)
    p = p * pl.reciprocal(jnp.sum(p, axis=-1, keepdims=True), approx=True)

    ctx = jnp.dot(p, v, preferred_element_type=jnp.float32)       # (S, D)

    # merge_heads folded into c_proj: accumulate ctx_h @ w_proj[h*D:(h+1)*D, :]
    # across the head (reduction) grid axis.
    acc_ref[...] += jnp.dot(ctx, wp_ref[0], preferred_element_type=jnp.float32)

    @pl.when(h == num_heads - 1)
    def _():
        o_ref[0] = (acc_ref[...] + bp_ref[...]).astype(o_ref.dtype)


def gpt2_attention(hidden_states, w_qkv, b_qkv, w_proj, b_proj):
    """hidden_states: (B, S, E) f32. Weights pre-transposed: w_qkv (E, 3E), w_proj (E, E)."""
    B, S, E = hidden_states.shape
    H, D = NUM_HEADS, HEAD_DIM
    assert H * D == E

    # Wrapper-side (pure XLA, outside the kernel) weight re-layout so the
    # kernel never transposes:
    #   c_attn columns per head -> (H, E, D) blocks for q, k, v
    #   c_proj rows per head    -> (H, D, E) blocks
    wq = w_qkv[:, :E].reshape(E, H, D).transpose(1, 0, 2)
    wk = w_qkv[:, E:2 * E].reshape(E, H, D).transpose(1, 0, 2)
    wv = w_qkv[:, 2 * E:].reshape(E, H, D).transpose(1, 0, 2)
    bq = b_qkv[0, :E].reshape(H, 1, D)
    bk = b_qkv[0, E:2 * E].reshape(H, 1, D)
    bv = b_qkv[0, 2 * E:].reshape(H, 1, D)
    wp = w_proj.reshape(H, D, E)

    kernel = functools.partial(gpt2_attn_head_kernel, num_heads=H, head_dim=D)

    flops = B * H * (3 * 2 * S * E * D      # q/k/v projections
                     + 2 * 2 * S * S * D    # scores + context
                     + 2 * S * D * E)       # per-head output projection
    transcendentals = B * H * S * S         # exp in softmax
    bytes_accessed = 4 * (2 * B * S * E + 4 * E * E + 4 * E)

    grid = (B, H)  # batch: parallel; head: output-projection reduction (last)

    head_w_spec = pl.BlockSpec((1, E, D), lambda b, h: (h, 0, 0))
    head_b_spec = pl.BlockSpec((1, 1, D), lambda b, h: (h, 0, 0))

    out = pl.pallas_call(
        kernel,
        out_shape=jax.ShapeDtypeStruct((B, S, E), hidden_states.dtype),
        grid=grid,
        in_specs=[
            pl.BlockSpec((1, S, E), lambda b, h: (b, 0, 0)),   # x (resident across h)
            head_w_spec, head_w_spec, head_w_spec,             # wq, wk, wv
            head_b_spec, head_b_spec, head_b_spec,             # bq, bk, bv
            pl.BlockSpec((1, D, E), lambda b, h: (h, 0, 0)),   # c_proj rows, head h
            pl.BlockSpec((1, E), lambda b, h: (0, 0)),         # b_proj (constant -> resident)
        ],
        out_specs=pl.BlockSpec((1, S, E), lambda b, h: (b, 0, 0)),
        scratch_shapes=[pltpu.VMEM((S, E), jnp.float32)],      # c_proj accumulator
        compiler_params=pltpu.CompilerParams(
            dimension_semantics=("parallel", "arbitrary"),
            vmem_limit_bytes=32 * 1024 * 1024),
        cost_estimate=pl.CostEstimate(flops=flops,
                                      transcendentals=transcendentals,
                                      bytes_accessed=bytes_accessed),
    )(hidden_states, wq, wk, wv, bq, bk, bv, wp, b_proj)

    # TODO(synk): at real GPT-2 shapes (S=1024, E=768) re-tile flash-style:
    # grid = (batch, head, q_tile) parallel x kv_tile 'arbitrary' (last),
    # online-softmax VMEM scratch accumulators, skip strictly-above-diagonal
    # kv tiles via pl.when, constant-index (single-buffered) weight specs,
    # kv tiles >=256 rows (128 on v5e), and bf16 MXU operands on v6e/v7x.
    return out


def gpt2_attention_ref(x, w_qkv, b_qkv, w_proj, b_proj):
    """Plain-JAX reference mirroring the PyTorch forward."""
    B, S, E = x.shape
    qkv = x @ w_qkv + b_qkv[0]
    q, k, v = jnp.split(qkv, 3, axis=-1)

    def split_heads(t):
        return t.reshape(B, S, NUM_HEADS, HEAD_DIM).transpose(0, 2, 1, 3)

    q, k, v = split_heads(q), split_heads(k), split_heads(v)
    scores = jnp.einsum('bhqd,bhkd->bhqk', q, k) / (float(HEAD_DIM) ** 0.5)
    causal = jnp.tril(jnp.ones((S, S), dtype=bool))
    scores = jnp.where(causal[None, None], scores, MASKED_BIAS)
    p = jax.nn.softmax(scores, axis=-1)
    out = jnp.einsum('bhqk,bhkd->bhqd', p, v)
    out = out.transpose(0, 2, 1, 3).reshape(B, S, E)
    return out @ w_proj + b_proj[0]


if __name__ == "__main__":
    key = jax.random.PRNGKey(0)
    kx, k1, k2, k3, k4 = jax.random.split(key, 5)

    # deterministic synthetic parameters (GPT-2 style init scale 0.02)
    x = jax.random.normal(kx, (BATCH, SEQ, EMBED), dtype=jnp.float32)
    w_qkv = 0.02 * jax.random.normal(k1, (EMBED, 3 * EMBED), dtype=jnp.float32)
    b_qkv = 0.02 * jax.random.normal(k2, (1, 3 * EMBED), dtype=jnp.float32)
    w_proj = 0.02 * jax.random.normal(k3, (EMBED, EMBED), dtype=jnp.float32)
    b_proj = 0.02 * jax.random.normal(k4, (1, EMBED), dtype=jnp.float32)

    out = gpt2_attention(x, w_qkv, b_qkv, w_proj, b_proj)
    out = jax.block_until_ready(out)

    ref = gpt2_attention_ref(x, w_qkv, b_qkv, w_proj, b_proj)
    assert out.shape == (BATCH, SEQ, EMBED)
    # tolerance relaxed (approx=True reciprocal in the softmax denominator)
    assert jnp.allclose(out, ref, atol=1e-3, rtol=1e-3), "mismatch vs reference"

    # TODO(synk): layer_past / use_cache (KV concat), cross-attention branch,
    # attention_mask / head_mask, and output_attentions are not exercised by
    # this default forward and are left unimplemented.
    print("KERNEL_OK")
</pallas_src>

<mosaic_0001>
module attributes {stable_mosaic.version = 11 : i64} {
  func.func @gpt2_attn_head_kernel(%arg0: i32, %arg1: i32, %arg2: memref<1x8x32xf32, #tpu.memory_space<vmem>>, %arg3: memref<1x32x8xf32, #tpu.memory_space<vmem>>, %arg4: memref<1x32x8xf32, #tpu.memory_space<vmem>>, %arg5: memref<1x32x8xf32, #tpu.memory_space<vmem>>, %arg6: memref<1x1x8xf32, #tpu.memory_space<vmem>>, %arg7: memref<1x1x8xf32, #tpu.memory_space<vmem>>, %arg8: memref<1x1x8xf32, #tpu.memory_space<vmem>>, %arg9: memref<1x8x32xf32, #tpu.memory_space<vmem>>, %arg10: memref<1x32xf32, #tpu.memory_space<vmem>>, %arg11: memref<1x8x32xf32, #tpu.memory_space<vmem>>, %arg12: memref<8x32xf32, #tpu.memory_space<vmem>>) attributes {dimension_semantics = [#tpu.dimension_semantics<parallel>, #tpu.dimension_semantics<arbitrary>], iteration_bounds = array<i64: 2, 4>, scalar_prefetch = 0 : i64, scratch_operands = 1 : i64, tpu.core_type = #tpu.core_type<tc>, window_params = [{transform_indices = @transform_0, window_bounds = array<i64: 1, 8, 32>}, {transform_indices = @transform_1, window_bounds = array<i64: 1, 32, 8>}, {transform_indices = @transform_2, window_bounds = array<i64: 1, 32, 8>}, {transform_indices = @transform_3, window_bounds = array<i64: 1, 32, 8>}, {transform_indices = @transform_4, window_bounds = array<i64: 1, 1, 8>}, {transform_indices = @transform_5, window_bounds = array<i64: 1, 1, 8>}, {transform_indices = @transform_6, window_bounds = array<i64: 1, 1, 8>}, {transform_indices = @transform_7, window_bounds = array<i64: 1, 8, 32>}, {pipeline_mode = #tpu.pipeline_mode<synchronous>, transform_indices = @transform_8, window_bounds = array<i64: 1, 32>}, {transform_indices = @transform_9, window_bounds = array<i64: 1, 8, 32>}]} {
    %c0_i32 = arith.constant 0 : i32
    %0 = arith.cmpi eq, %arg1, %c0_i32 : i32
    %1 = arith.extui %0 : i1 to i32
    %c0_i32_0 = arith.constant 0 : i32
    %2 = arith.cmpi ne, %1, %c0_i32_0 : i32
    scf.if %2 {
      %cst_38 = arith.constant 0.000000e+00 : f32
      %54 = vector.broadcast %cst_38 : f32 to vector<8x32xf32>
      %c0_39 = arith.constant 0 : index
      %c0_40 = arith.constant 0 : index
      %55 = vector.load %arg12[%c0_39, %c0_40] : memref<8x32xf32, #tpu.memory_space<vmem>>, vector<8x32xf32>
      tpu.vector_store %arg12[%c0_39, %c0_40], %54 {strides = array<i32>} : memref<8x32xf32, #tpu.memory_space<vmem>>, vector<8x32xf32>,
    } else {
    }
    %c0 = arith.constant 0 : index
    %c0_1 = arith.constant 0 : index
    %c0_2 = arith.constant 0 : index
    %3 = vector.load %arg2[%c0, %c0_1, %c0_2] : memref<1x8x32xf32, #tpu.memory_space<vmem>>, vector<1x8x32xf32>
    %4 = vector.shape_cast %3 : vector<1x8x32xf32> to vector<8x32xf32>
    %c0_3 = arith.constant 0 : index
    %c0_4 = arith.constant 0 : index
    %c0_5 = arith.constant 0 : index
    %5 = vector.load %arg3[%c0_3, %c0_4, %c0_5] : memref<1x32x8xf32, #tpu.memory_space<vmem>>, vector<1x32x8xf32>
    %6 = vector.shape_cast %5 : vector<1x32x8xf32> to vector<32x8xf32>
    %cst = arith.constant dense<0.000000e+00> : vector<8x8xf32>
    %7 = tpu.matmul %4, %6, %cst {dimension_numbers = #tpu.dot_dimension_numbers<[1], [0], [0], [1], [0, 0, 1, 1], [], []>} : vector<8x32xf32>, vector<32x8xf32>, vector<8x8xf32> -> vector<8x8xf32>
    %c0_6 = arith.constant 0 : index
    %c0_7 = arith.constant 0 : index
    %c0_8 = arith.constant 0 : index
    %8 = vector.load %arg6[%c0_6, %c0_7, %c0_8] : memref<1x1x8xf32, #tpu.memory_space<vmem>>, vector<1x1x8xf32>
    %9 = vector.shape_cast %8 : vector<1x1x8xf32> to vector<1x8xf32>
    %10 = vector.broadcast %9 : vector<1x8xf32> to vector<8x8xf32>
    %11 = arith.addf %7, %10 : vector<8x8xf32>
    %cst_9 = arith.constant 0.353553385 : f32
    %12 = vector.broadcast %cst_9 : f32 to vector<8x8xf32>
    %13 = arith.mulf %11, %12 : vector<8x8xf32>
    %c0_10 = arith.constant 0 : index
    %c0_11 = arith.constant 0 : index
    %c0_12 = arith.constant 0 : index
    %14 = vector.load %arg4[%c0_10, %c0_11, %c0_12] : memref<1x32x8xf32, #tpu.memory_space<vmem>>, vector<1x32x8xf32>
    %15 = vector.shape_cast %14 : vector<1x32x8xf32> to vector<32x8xf32>
    %cst_13 = arith.constant dense<0.000000e+00> : vector<8x8xf32>
    %16 = tpu.matmul %4, %15, %cst_13 {dimension_numbers = #tpu.dot_dimension_numbers<[1], [0], [0], [1], [0, 0, 1, 1], [], []>} : vector<8x32xf32>, vector<32x8xf32>, vector<8x8xf32> -> vector<8x8xf32>
    %c0_14 = arith.constant 0 : index
    %c0_15 = arith.constant 0 : index
    %c0_16 = arith.constant 0 : index
    %17 = vector.load %arg7[%c0_14, %c0_15, %c0_16] : memref<1x1x8xf32, #tpu.memory_space<vmem>>, vector<1x1x8xf32>
    %18 = vector.shape_cast %17 : vector<1x1x8xf32> to vector<1x8xf32>
    %19 = vector.broadcast %18 : vector<1x8xf32> to vector<8x8xf32>
    %20 = arith.addf %16, %19 : vector<8x8xf32>
    %c0_17 = arith.constant 0 : index
    %c0_18 = arith.constant 0 : index
    %c0_19 = arith.constant 0 : index
    %21 = vector.load %arg5[%c0_17, %c0_18, %c0_19] : memref<1x32x8xf32, #tpu.memory_space<vmem>>, vector<1x32x8xf32>
    %22 = vector.shape_cast %21 : vector<1x32x8xf32> to vector<32x8xf32>
    %cst_20 = arith.constant dense<0.000000e+00> : vector<8x8xf32>
    %23 = tpu.matmul %4, %22, %cst_20 {dimension_numbers = #tpu.dot_dimension_numbers<[1], [0], [0], [1], [0, 0, 1, 1], [], []>} : vector<8x32xf32>, vector<32x8xf32>, vector<8x8xf32> -> vector<8x8xf32>
    %c0_21 = arith.constant 0 : index
    %c0_22 = arith.constant 0 : index
    %c0_23 = arith.constant 0 : index
    %24 = vector.load %arg8[%c0_21, %c0_22, %c0_23] : memref<1x1x8xf32, #tpu.memory_space<vmem>>, vector<1x1x8xf32>
    %25 = vector.shape_cast %24 : vector<1x1x8xf32> to vector<1x8xf32>
    %26 = vector.broadcast %25 : vector<1x8xf32> to vector<8x8xf32>
    %27 = arith.addf %23, %26 : vector<8x8xf32>
    %cst_24 = arith.constant dense<0.000000e+00> : vector<8x8xf32>
    %28 = tpu.matmul %13, %20, %cst_24 {dimension_numbers = #tpu.dot_dimension_numbers<[1], [1], [0], [0], [0, 0, 1, 0], [], []>} : vector<8x8xf32>, vector<8x8xf32>, vector<8x8xf32> -> vector<8x8xf32>
    %29 = tpu.iota {dimensions = array<i32: 0>} : vector<8x8xi32>
    %30 = tpu.iota {dimensions = array<i32: 1>} : vector<8x8xi32>
    %31 = arith.cmpi sle, %30, %29 : vector<8x8xi32>
    %cst_25 = arith.constant -1.000000e+04 : f32
    %32 = vector.broadcast %cst_25 : f32 to vector<8x8xf32>
    %33 = arith.select %31, %28, %32 : vector<8x8xi1>, vector<8x8xf32>
    %cst_26 = arith.constant dense<0xFF800000> : vector<8xf32>
    %34 = vector.multi_reduction <maximumf>, %33, %cst_26 [1] : vector<8x8xf32> to vector<8xf32>
    %35 = vector.shape_cast %34 : vector<8xf32> to vector<8x1xf32>
    %36 = vector.broadcast %35 : vector<8x1xf32> to vector<8x8xf32>
    %37 = arith.subf %33, %36 : vector<8x8xf32>
    %38 = math.exp %37 : vector<8x8xf32>
    %cst_27 = arith.constant dense<0.000000e+00> : vector<8xf32>
    %39 = vector.multi_reduction <add>, %38, %cst_27 [1] : vector<8x8xf32> to vector<8xf32>
    %40 = vector.shape_cast %39 : vector<8xf32> to vector<8x1xf32>
    %41 = tpu.reciprocal %40 {approx = true} : vector<8x1xf32> -> vector<8x1xf32>
    %42 = vector.broadcast %41 : vector<8x1xf32> to vector<8x8xf32>
    %43 = arith.mulf %38, %42 : vector<8x8xf32>
    %cst_28 = arith.constant dense<0.000000e+00> : vector<8x8xf32>
    %44 = tpu.matmul %43, %27, %cst_28 {dimension_numbers = #tpu.dot_dimension_numbers<[1], [0], [0], [1], [0, 0, 1, 1], [], []>} : vector<8x8xf32>, vector<8x8xf32>, vector<8x8xf32> -> vector<8x8xf32>
    %c0_29 = arith.constant 0 : index
    %c0_30 = arith.constant 0 : index
    %45 = vector.load %arg12[%c0_29, %c0_30] : memref<8x32xf32, #tpu.memory_space<vmem>>, vector<8x32xf32>
    %c0_31 = arith.constant 0 : index
    %c0_32 = arith.constant 0 : index
    %c0_33 = arith.constant 0 : index
    %46 = vector.load %arg9[%c0_31, %c0_32, %c0_33] : memref<1x8x32xf32, #tpu.memory_space<vmem>>, vector<1x8x32xf32>
    %47 = vector.shape_cast %46 : vector<1x8x32xf32> to vector<8x32xf32>
    %cst_34 = arith.constant dense<0.000000e+00> : vector<8x32xf32>
    %48 = tpu.matmul %44, %47, %cst_34 {dimension_numbers = #tpu.dot_dimension_numbers<[1], [0], [0], [1], [0, 0, 1, 1], [], []>} : vector<8x8xf32>, vector<8x32xf32>, vector<8x32xf32> -> vector<8x32xf32>
    %49 = arith.addf %45, %48 : vector<8x32xf32>
    %c0_35 = arith.constant 0 : index
    %c0_36 = arith.constant 0 : index
    %50 = vector.load %arg12[%c0_35, %c0_36] : memref<8x32xf32, #tpu.memory_space<vmem>>, vector<8x32xf32>
    tpu.vector_store %arg12[%c0_35, %c0_36], %49 {strides = array<i32>} : memref<8x32xf32, #tpu.memory_space<vmem>>, vector<8x32xf32>,
    %c3_i32 = arith.constant 3 : i32
    %51 = arith.cmpi eq, %arg1, %c3_i32 : i32
    %52 = arith.extui %51 : i1 to i32
    %c0_i32_37 = arith.constant 0 : i32
    %53 = arith.cmpi ne, %52, %c0_i32_37 : i32
    scf.if %53 {
      %c0_38 = arith.constant 0 : index
      %c0_39 = arith.constant 0 : index
      %54 = vector.load %arg12[%c0_38, %c0_39] : memref<8x32xf32, #tpu.memory_space<vmem>>, vector<8x32xf32>
      %c0_40 = arith.constant 0 : index
      %c0_41 = arith.constant 0 : index
      %55 = vector.load %arg10[%c0_40, %c0_41] : memref<1x32xf32, #tpu.memory_space<vmem>>, vector<1x32xf32>
      %56 = vector.broadcast %55 : vector<1x32xf32> to vector<8x32xf32>
      %57 = arith.addf %54, %56 : vector<8x32xf32>
      %c0_42 = arith.constant 0 : index
      %c0_43 = arith.constant 0 : index
      %c0_44 = arith.constant 0 : index
      %58 = vector.load %arg11[%c0_42, %c0_43, %c0_44] : memref<1x8x32xf32, #tpu.memory_space<vmem>>, vector<1x8x32xf32>
      %59 = vector.shape_cast %58 : vector<1x8x32xf32> to vector<8x32xf32>
      %60 = vector.shape_cast %57 : vector<8x32xf32> to vector<1x8x32xf32>
      tpu.vector_store %arg11[%c0_42, %c0_43, %c0_44], %60 {strides = array<i32>} : memref<1x8x32xf32, #tpu.memory_space<vmem>>, vector<1x8x32xf32>,
    } else {
    }
    return
  }
  func.func @transform_0(%arg0: i32, %arg1: i32) -> (i32, i32, i32) {
    %c0_i32 = arith.constant 0 : i32
    %c0_i32_0 = arith.constant 0 : i32
    %c0_i32_1 = arith.constant 0 : i32
    return %arg0, %c0_i32, %c0_i32_0 : i32, i32, i32
  }
  func.func @transform_1(%arg0: i32, %arg1: i32) -> (i32, i32, i32) {
    %c0_i32 = arith.constant 0 : i32
    %c0_i32_0 = arith.constant 0 : i32
    %c0_i32_1 = arith.constant 0 : i32
    return %arg1, %c0_i32, %c0_i32_0 : i32, i32, i32
  }
  func.func @transform_2(%arg0: i32, %arg1: i32) -> (i32, i32, i32) {
    %c0_i32 = arith.constant 0 : i32
    %c0_i32_0 = arith.constant 0 : i32
    %c0_i32_1 = arith.constant 0 : i32
    return %arg1, %c0_i32, %c0_i32_0 : i32, i32, i32
  }
  func.func @transform_3(%arg0: i32, %arg1: i32) -> (i32, i32, i32) {
    %c0_i32 = arith.constant 0 : i32
    %c0_i32_0 = arith.constant 0 : i32
    %c0_i32_1 = arith.constant 0 : i32
    return %arg1, %c0_i32, %c0_i32_0 : i32, i32, i32
  }
  func.func @transform_4(%arg0: i32, %arg1: i32) -> (i32, i32, i32) {
    %c0_i32 = arith.constant 0 : i32
    %c0_i32_0 = arith.constant 0 : i32
    %c0_i32_1 = arith.constant 0 : i32
    return %arg1, %c0_i32, %c0_i32_0 : i32, i32, i32
  }
  func.func @transform_5(%arg0: i32, %arg1: i32) -> (i32, i32, i32) {
    %c0_i32 = arith.constant 0 : i32
    %c0_i32_0 = arith.constant 0 : i32
    %c0_i32_1 = arith.constant 0 : i32
    return %arg1, %c0_i32, %c0_i32_0 : i32, i32, i32
  }
  func.func @transform_6(%arg0: i32, %arg1: i32) -> (i32, i32, i32) {
    %c0_i32 = arith.constant 0 : i32
    %c0_i32_0 = arith.constant 0 : i32
    %c0_i32_1 = arith.constant 0 : i32
    return %arg1, %c0_i32, %c0_i32_0 : i32, i32, i32
  }
  func.func @transform_7(%arg0: i32, %arg1: i32) -> (i32, i32, i32) {
    %c0_i32 = arith.constant 0 : i32
    %c0_i32_0 = arith.constant 0 : i32
    %c0_i32_1 = arith.constant 0 : i32
    return %arg1, %c0_i32, %c0_i32_0 : i32, i32, i32
  }
  func.func @transform_8(%arg0: i32, %arg1: i32) -> (i32, i32) {
    %c0_i32 = arith.constant 0 : i32
    %c0_i32_0 = arith.constant 0 : i32
    %c0_i32_1 = arith.constant 0 : i32
    return %c0_i32, %c0_i32_0 : i32, i32
  }
  func.func @transform_9(%arg0: i32, %arg1: i32) -> (i32, i32, i32) {
    %c0_i32 = arith.constant 0 : i32
    %c0_i32_0 = arith.constant 0 : i32
    %c0_i32_1 = arith.constant 0 : i32
    return %arg0, %c0_i32, %c0_i32_0 : i32, i32, i32
  }
}

</mosaic_0001>

<llo_original>
// kernel: tpu_custom_call.1
$region0: #{tpu_custom_call.1}
  #allocation0 [shape = 'u32[]', space=smem, size = 0x4, offset = 0x4, fixed_abs, tag = 'smem constant byte address 0x4 - core index']
  #allocation1 [shape = 'u32[144,128]{1,0:T(1,128)}', space=vmem, size = 0x12000, scoped, tag = 'internal scratch']
  #allocation2 [shape = 'f32[8,32]{1,0:T(8,128)}', space=vmem, size = 0x1000, scoped, tag = 'scratch operand']
  %s0 = inlined_call_operand.vmem [shape: f32[2,8,32], index: 0, kind: input, shape index: {}]
  %s1 = inlined_call_operand.vmem [shape: f32[4,32,8], index: 1, kind: input, shape index: {}]
  %s2 = inlined_call_operand.vmem [shape: f32[4,32,8], index: 2, kind: input, shape index: {}]
  %s3 = inlined_call_operand.vmem [shape: f32[4,32,8], index: 3, kind: input, shape index: {}]
  %s4 = inlined_call_operand.vmem [shape: f32[4,1,8], index: 4, kind: input, shape index: {}]
  %s5 = inlined_call_operand.vmem [shape: f32[4,1,8], index: 5, kind: input, shape index: {}]
  %s6 = inlined_call_operand.vmem [shape: f32[4,1,8], index: 6, kind: input, shape index: {}]
  %s7 = inlined_call_operand.vmem [shape: f32[4,8,32], index: 7, kind: input, shape index: {}]
  %s8 = inlined_call_operand.vmem [shape: f32[1,32], index: 8, kind: input, shape index: {}]
  %s9 = inlined_call_operand.hbm [shape: f32[2,8,32], index: 9, kind: output, shape index: {}]
  %s10 = sld [smem:[#allocation0]]
  $region77: #{tpu_custom_call.1} parent=0
    _
  %s12 = ssub.s32 1, %s10
  %s13 = scalar_select 0, %s12, %s10
  $region1: #{tpu_custom_call.1} parent=0
    #allocation3 [shape = 'u8[8192]{0}', space=vmem, size = 0x2000, scoped, tag = 'output window, operand 0']
    #allocation4 [shape = 's32[2]{0}', space=sflag, size = 0x8, scoped, tag = 'scoped memory for tpu_custom_call.1']
    %14 = vsyncpa [#allocation4], 0
    %s15 = scalar_lea.sflag [#allocation4], 1
    %16 = vsyncpa %s15, 0
    loop: start=0, step=1, limit=10
    $region2: #{tpu_custom_call.1} parent=1 // loop_pre_header
      _
    $region3: #{tpu_custom_call.1} parent=1 // loop_header
      %s18 = sphi 0, %s22
      %p19 = scmp.ge.s32.totalorder %s18, 10
      %s25 = sphi 0, %s37
      %s26 = sphi 0, %s33
      %s27 = sphi 0, %s25
      %s28 = sphi 0, %s26
      %s29 = sphi 0, %s27
      %s30 = sphi 0, %s28
      %s40 = sphi 0, %s42
      %s43 = sphi 0, %s40
      %s44 = sphi 0, %s43
      %s60 = sphi 0, %s44
      %s66 = sphi 0, %s68
      %s69 = sphi 0, %s66
      %s70 = sphi 0, %s69
      %s86 = sphi 0, %s70
      %s92 = sphi 0, %s94
      %s95 = sphi 0, %s92
      %s96 = sphi 0, %s95
      %s112 = sphi 0, %s96
      %s118 = sphi 0, %s120
      %s121 = sphi 0, %s118
      %s122 = sphi 0, %s121
      %s138 = sphi 0, %s122
      %s144 = sphi 0, %s146
      %s147 = sphi 0, %s144
      %s148 = sphi 0, %s147
      %s164 = sphi 0, %s148
      %s170 = sphi 0, %s172
      %s173 = sphi 0, %s170
      %s174 = sphi 0, %s173
      %s190 = sphi 0, %s174
      %s196 = sphi 0, %s198
      %s199 = sphi 0, %s196
      %s200 = sphi 0, %s199
      %s216 = sphi 0, %s200
      %s222 = sphi 0, %s224
      %s225 = sphi 0, %s222
      %s226 = sphi 0, %s225
      %s242 = sphi 0, %s226
      %s246 = sphi 0, %s246
      %s248 = sphi 0, %s246
      %s249 = sphi 0, %s248
      %s263 = sphi 0, %s249
      %s269 = sphi 0, %s271
      %s272 = sphi 0, %s269
      %s273 = sphi 0, %s272
      %s289 = sphi 0, %s273
    $region4: #{tpu_custom_call.1} parent=1 // loop_header_branch
      %21 = sbr.rel (%p19) target = $region8
    $region5: #{tpu_custom_call.1} parent=1 // loop_body
      %s23 = ssub.s32 %s18, 1
      %s24 = ssub.s32 %s18, 2
      %s31 = sadd.s32 1, %s26
      %p32 = scmp.ge.s32.totalorder %s31, 4
      %s33 = scalar_select %p32, 0, %s31
      %s34 = sadd.s32 1, %s25
      %s35 = scalar_select %p32, %s34, %s25
      %p36 = scmp.ge.s32.totalorder %s35, 2
      %s37 = scalar_select %p36, 0, %s35
      %s38 = ssub.s32 %s25, %s37
      %p39 = scmp.eq.s32.totalorder %s38, 0
      %s41 = sadd.s32 %s40, 1
      %s42 = scalar_select %p39, %s40, %s41
      %p45 = pneg %p39
      %p46 = scmp.eq.s32.totalorder %s18, 7
      %p47 = por %p45, %p46
      %p48 = scmp.ne.s32.totalorder %s40, %s43
      %p49 = scmp.eq.s32.totalorder %s18, 0
      %p50 = por %p48, %p49
      %p51 = scmp.ne.s32.totalorder %s40, %s43
      %p52 = scmp.eq.s32.totalorder %s23, 7
      %p53 = por %p51, %p52
      %p54 = scmp.ne.s32.totalorder %s43, %s44
      %p55 = scmp.eq.s32.totalorder %s23, 0
      %p56 = por %p54, %p55
      %p57 = scmp.ne.s32.totalorder %s43, %s44
      %p58 = scmp.eq.s32.totalorder %s24, 7
      %p59 = por %p57, %p58
      %p61 = scmp.ne.s32.totalorder %s44, %s60
      %p62 = scmp.eq.s32.totalorder %s24, 0
      %p63 = por %p61, %p62
      %s64 = ssub.s32 %s26, %s33
      %p65 = scmp.eq.s32.totalorder %s64, 0
      %s67 = sadd.s32 %s66, 1
      %s68 = scalar_select %p65, %s66, %s67
      %p71 = pneg %p65
      %p72 = scmp.eq.s32.totalorder %s18, 7
      %p73 = por %p71, %p72
      %p74 = scmp.ne.s32.totalorder %s66, %s69
      %p75 = scmp.eq.s32.totalorder %s18, 0
      %p76 = por %p74, %p75
      %p77 = scmp.ne.s32.totalorder %s66, %s69
      %p78 = scmp.eq.s32.totalorder %s23, 7
      %p79 = por %p77, %p78
      %p80 = scmp.ne.s32.totalorder %s69, %s70
      %p81 = scmp.eq.s32.totalorder %s23, 0
      %p82 = por %p80, %p81
      %p83 = scmp.ne.s32.totalorder %s69, %s70
      %p84 = scmp.eq.s32.totalorder %s24, 7
      %p85 = por %p83, %p84
      %p87 = scmp.ne.s32.totalorder %s70, %s86
      %p88 = scmp.eq.s32.totalorder %s24, 0
      %p89 = por %p87, %p88
      %s90 = ssub.s32 %s26, %s33
      %p91 = scmp.eq.s32.totalorder %s90, 0
      %s93 = sadd.s32 %s92, 1
      %s94 = scalar_select %p91, %s92, %s93
      %p97 = pneg %p91
      %p98 = scmp.eq.s32.totalorder %s18, 7
      %p99 = por %p97, %p98
      %p100 = scmp.ne.s32.totalorder %s92, %s95
      %p101 = scmp.eq.s32.totalorder %s18, 0
      %p102 = por %p100, %p101
      %p103 = scmp.ne.s32.totalorder %s92, %s95
      %p104 = scmp.eq.s32.totalorder %s23, 7
      %p105 = por %p103, %p104
      %p106 = scmp.ne.s32.totalorder %s95, %s96
      %p107 = scmp.eq.s32.totalorder %s23, 0
      %p108 = por %p106, %p107
      %p109 = scmp.ne.s32.totalorder %s95, %s96
      %p110 = scmp.eq.s32.totalorder %s24, 7
      %p111 = por %p109, %p110
      %p113 = scmp.ne.s32.totalorder %s96, %s112
      %p114 = scmp.eq.s32.totalorder %s24, 0
      %p115 = por %p113, %p114
      %s116 = ssub.s32 %s26, %s33
      %p117 = scmp.eq.s32.totalorder %s116, 0
      %s119 = sadd.s32 %s118, 1
      %s120 = scalar_select %p117, %s118, %s119
      %p123 = pneg %p117
      %p124 = scmp.eq.s32.totalorder %s18, 7
      %p125 = por %p123, %p124
      %p126 = scmp.ne.s32.totalorder %s118, %s121
      %p127 = scmp.eq.s32.totalorder %s18, 0
      %p128 = por %p126, %p127
      %p129 = scmp.ne.s32.totalorder %s118, %s121
      %p130 = scmp.eq.s32.totalorder %s23, 7
      %p131 = por %p129, %p130
      %p132 = scmp.ne.s32.totalorder %s121, %s122
      %p133 = scmp.eq.s32.totalorder %s23, 0
      %p134 = por %p132, %p133
      %p135 = scmp.ne.s32.totalorder %s121, %s122
      %p136 = scmp.eq.s32.totalorder %s24, 7
      %p137 = por %p135, %p136
      %p139 = scmp.ne.s32.totalorder %s122, %s138
      %p140 = scmp.eq.s32.totalorder %s24, 0
      %p141 = por %p139, %p140
      %s142 = ssub.s32 %s26, %s33
      %p143 = scmp.eq.s32.totalorder %s142, 0
      %s145 = sadd.s32 %s144, 1
      %s146 = scalar_select %p143, %s144, %s145
      %p149 = pneg %p143
      %p150 = scmp.eq.s32.totalorder %s18, 7
      %p151 = por %p149, %p150
      %p152 = scmp.ne.s32.totalorder %s144, %s147
      %p153 = scmp.eq.s32.totalorder %s18, 0
      %p154 = por %p152, %p153
      %p155 = scmp.ne.s32.totalorder %s144, %s147
      %p156 = scmp.eq.s32.totalorder %s23, 7
      %p157 = por %p155, %p156
      %p158 = scmp.ne.s32.totalorder %s147, %s148
      %p159 = scmp.eq.s32.totalorder %s23, 0
      %p160 = por %p158, %p159
      %p161 = scmp.ne.s32.totalorder %s147, %s148
      %p162 = scmp.eq.s32.totalorder %s24, 7
      %p163 = por %p161, %p162
      %p165 = scmp.ne.s32.totalorder %s148, %s164
      %p166 = scmp.eq.s32.totalorder %s24, 0
      %p167 = por %p165, %p166
      %s168 = ssub.s32 %s26, %s33
      %p169 = scmp.eq.s32.totalorder %s168, 0
      %s171 = sadd.s32 %s170, 1
      %s172 = scalar_select %p169, %s170, %s171
      %p175 = pneg %p169
      %p176 = scmp.eq.s32.totalorder %s18, 7
      %p177 = por %p175, %p176
      %p178 = scmp.ne.s32.totalorder %s170, %s173
      %p179 = scmp.eq.s32.totalorder %s18, 0
      %p180 = por %p178, %p179
      %p181 = scmp.ne.s32.totalorder %s170, %s173
      %p182 = scmp.eq.s32.totalorder %s23, 7
      %p183 = por %p181, %p182
      %p184 = scmp.ne.s32.totalorder %s173, %s174
      %p185 = scmp.eq.s32.totalorder %s23, 0
      %p186 = por %p184, %p185
      %p187 = scmp.ne.s32.totalorder %s173, %s174
      %p188 = scmp.eq.s32.totalorder %s24, 7
      %p189 = por %p187, %p188
      %p191 = scmp.ne.s32.totalorder %s174, %s190
      %p192 = scmp.eq.s32.totalorder %s24, 0
      %p193 = por %p191, %p192
      %s194 = ssub.s32 %s26, %s33
      %p195 = scmp.eq.s32.totalorder %s194, 0
      %s197 = sadd.s32 %s196, 1
      %s198 = scalar_select %p195, %s196, %s197
      %p201 = pneg %p195
      %p202 = scmp.eq.s32.totalorder %s18, 7
      %p203 = por %p201, %p202
      %p204 = scmp.ne.s32.totalorder %s196, %s199
      %p205 = scmp.eq.s32.totalorder %s18, 0
      %p206 = por %p204, %p205
      %p207 = scmp.ne.s32.totalorder %s196, %s199
      %p208 = scmp.eq.s32.totalorder %s23, 7
      %p209 = por %p207, %p208
      %p210 = scmp.ne.s32.totalorder %s199, %s200
      %p211 = scmp.eq.s32.totalorder %s23, 0
      %p212 = por %p210, %p211
      %p213 = scmp.ne.s32.totalorder %s199, %s200
      %p214 = scmp.eq.s32.totalorder %s24, 7
      %p215 = por %p213, %p214
      %p217 = scmp.ne.s32.totalorder %s200, %s216
      %p218 = scmp.eq.s32.totalorder %s24, 0
      %p219 = por %p217, %p218
      %s220 = ssub.s32 %s26, %s33
      %p221 = scmp.eq.s32.totalorder %s220, 0
      %s223 = sadd.s32 %s222, 1
      %s224 = scalar_select %p221, %s222, %s223
      %p227 = pneg %p221
      %p228 = scmp.eq.s32.totalorder %s18, 7
      %p229 = por %p227, %p228
      %p230 = scmp.ne.s32.totalorder %s222, %s225
      %p231 = scmp.eq.s32.totalorder %s18, 0
      %p232 = por %p230, %p231
      %p233 = scmp.ne.s32.totalorder %s222, %s225
      %p234 = scmp.eq.s32.totalorder %s23, 7
      %p235 = por %p233, %p234
      %p236 = scmp.ne.s32.totalorder %s225, %s226
      %p237 = scmp.eq.s32.totalorder %s23, 0
      %p238 = por %p236, %p237
      %p239 = scmp.ne.s32.totalorder %s225, %s226
      %p240 = scmp.eq.s32.totalorder %s24, 7
      %p241 = por %p239, %p240
      %p243 = scmp.ne.s32.totalorder %s226, %s242
      %p244 = scmp.eq.s32.totalorder %s24, 0
      %p245 = por %p243, %p244
      %s247 = sadd.s32 %s246, 1
      %p250 = scmp.eq.s32.totalorder %s18, 7
      %p251 = scmp.ne.s32.totalorder %s246, %s248
      %p252 = scmp.eq.s32.totalorder %s18, 0
      %p253 = por %p251, %p252
      %p254 = scmp.ne.s32.totalorder %s246, %s248
      %p255 = scmp.eq.s32.totalorder %s23, 7
      %p256 = por %p254, %p255
      %p257 = scmp.ne.s32.totalorder %s248, %s249
      %p258 = scmp.eq.s32.totalorder %s23, 0
      %p259 = por %p257, %p258
      %p260 = scmp.ne.s32.totalorder %s248, %s249
      %p261 = scmp.eq.s32.totalorder %s24, 7
      %p262 = por %p260, %p261
      %p264 = scmp.ne.s32.totalorder %s249, %s263
      %p265 = scmp.eq.s32.totalorder %s24, 0
      %p266 = por %p264, %p265
      %s267 = ssub.s32 %s25, %s37
      %p268 = scmp.eq.s32.totalorder %s267, 0
      %s270 = sadd.s32 %s269, 1
      %s271 = scalar_select %p268, %s269, %s270
      %p274 = pneg %p268
      %p275 = scmp.eq.s32.totalorder %s18, 7
      %p276 = por %p274, %p275
      %p277 = scmp.ne.s32.totalorder %s269, %s272
      %p278 = scmp.eq.s32.totalorder %s18, 0
      %p279 = por %p277, %p278
      %p280 = scmp.ne.s32.totalorder %s269, %s272
      %p281 = scmp.eq.s32.totalorder %s23, 7
      %p282 = por %p280, %p281
      %p283 = scmp.ne.s32.totalorder %s272, %s273
      %p284 = scmp.eq.s32.totalorder %s23, 0
      %p285 = por %p283, %p284
      %p286 = scmp.ne.s32.totalorder %s272, %s273
      %p287 = scmp.eq.s32.totalorder %s24, 7
      %p288 = por %p286, %p287
      %p290 = scmp.ne.s32.totalorder %s273, %s289
      %p291 = scmp.eq.s32.totalorder %s24, 0
      %p292 = por %p290, %p291
      %p293 = scmp.le.s32.totalorder 1, %s18
      %p294 = scmp.lt.s32.totalorder %s18, 9
      %p295 = pnand %p293, %p294
      %p296 = pneg %p295
      // Predicated region
      $region9: #{tpu_custom_call.1} parent=5 // pred_check
        _
      $region10: #{tpu_custom_call.1} parent=5 // pred_check_branch
        %298 = sbr.rel (%p295) target = $region12
      $region11: #{tpu_custom_call.1} parent=5 // pred_region
        %s299 = ssub.s32 %s18, 1
        // Predicated region
        $region13: #{tpu_custom_call.1} parent=11 // pred_check
          %p300 = pneg %p259
        $region14: #{tpu_custom_call.1} parent=11 // pred_check_branch
          %302 = sbr.rel (%p300) target = $region16
        $region15: #{tpu_custom_call.1} parent=11 // pred_region
          _
        $region16: #{tpu_custom_call.1} parent=11 // pred_fallthru
          _
      $region12: #{tpu_custom_call.1} parent=5 // pred_fallthru
        _
      %p303 = scmp.lt.s32.totalorder %s18, 8
      // Predicated region
      $region17: #{tpu_custom_call.1} parent=5 // pred_check
        %p304 = pneg %p303
      $region18: #{tpu_custom_call.1} parent=5 // pred_check_branch
        %306 = sbr.rel (%p304) target = $region20
      $region19: #{tpu_custom_call.1} parent=5 // pred_region
        // Predicated region
        $region21: #{tpu_custom_call.1} parent=19 // pred_check
          %p307 = pneg %p50
        $region22: #{tpu_custom_call.1} parent=19 // pred_check_branch
          %309 = sbr.rel (%p307) target = $region24
        $region23: #{tpu_custom_call.1} parent=19 // pred_region
          %p310 = scmp.lt.s32.totalorder %s25, 1
          %s311 = scalar_select %p310, %s25, 1
          %s312 = smul.addr %s311, 8
          %s313 = scalar_lea.vmem %s0, %s312
        $region24: #{tpu_custom_call.1} parent=19 // pred_fallthru
          _
        // Predicated region
        $region25: #{tpu_custom_call.1} parent=19 // pred_check
          %p314 = pneg %p76
        $region26: #{tpu_custom_call.1} parent=19 // pred_check_branch
          %316 = sbr.rel (%p314) target = $region28
        $region27: #{tpu_custom_call.1} parent=19 // pred_region
          %p317 = scmp.lt.s32.totalorder %s26, 3
          %s318 = scalar_select %p317, %s26, 3
          %s319 = smul.addr %s318, 4
          %s320 = smul.addr %s319, 8
          %s321 = scalar_lea.vmem %s1, %s320
        $region28: #{tpu_custom_call.1} parent=19 // pred_fallthru
          _
        // Predicated region
        $region29: #{tpu_custom_call.1} parent=19 // pred_check
          %p322 = pneg %p102
        $region30: #{tpu_custom_call.1} parent=19 // pred_check_branch
          %324 = sbr.rel (%p322) target = $region32
        $region31: #{tpu_custom_call.1} parent=19 // pred_region
          %p325 = scmp.lt.s32.totalorder %s26, 3
          %s326 = scalar_select %p325, %s26, 3
          %s327 = smul.addr %s326, 4
          %s328 = smul.addr %s327, 8
          %s329 = scalar_lea.vmem %s2, %s328
        $region32: #{tpu_custom_call.1} parent=19 // pred_fallthru
          _
        // Predicated region
        $region33: #{tpu_custom_call.1} parent=19 // pred_check
          %p330 = pneg %p128
        $region34: #{tpu_custom_call.1} parent=19 // pred_check_branch
          %332 = sbr.rel (%p330) target = $region36
        $region35: #{tpu_custom_call.1} parent=19 // pred_region
          %p333 = scmp.lt.s32.totalorder %s26, 3
          %s334 = scalar_select %p333, %s26, 3
          %s335 = smul.addr %s334, 4
          %s336 = smul.addr %s335, 8
          %s337 = scalar_lea.vmem %s3, %s336
        $region36: #{tpu_custom_call.1} parent=19 // pred_fallthru
          _
        // Predicated region
        $region37: #{tpu_custom_call.1} parent=19 // pred_check
          %p338 = pneg %p154
        $region38: #{tpu_custom_call.1} parent=19 // pred_check_branch
          %340 = sbr.rel (%p338) target = $region40
        $region39: #{tpu_custom_call.1} parent=19 // pred_region
          %p341 = scmp.lt.s32.totalorder %s26, 3
          %s342 = scalar_select %p341, %s26, 3
          %s343 = scalar_lea.vmem %s4, %s342
        $region40: #{tpu_custom_call.1} parent=19 // pred_fallthru
          _
        // Predicated region
        $region41: #{tpu_custom_call.1} parent=19 // pred_check
          %p344 = pneg %p180
        $region42: #{tpu_custom_call.1} parent=19 // pred_check_branch
          %346 = sbr.rel (%p344) target = $region44
        $region43: #{tpu_custom_call.1} parent=19 // pred_region
          %p347 = scmp.lt.s32.totalorder %s26, 3
          %s348 = scalar_select %p347, %s26, 3
          %s349 = scalar_lea.vmem %s5, %s348
        $region44: #{tpu_custom_call.1} parent=19 // pred_fallthru
          _
        // Predicated region
        $region45: #{tpu_custom_call.1} parent=19 // pred_check
          %p350 = pneg %p206
        $region46: #{tpu_custom_call.1} parent=19 // pred_check_branch
          %352 = sbr.rel (%p350) target = $region48
        $region47: #{tpu_custom_call.1} parent=19 // pred_region
          %p353 = scmp.lt.s32.totalorder %s26, 3
          %s354 = scalar_select %p353, %s26, 3
          %s355 = scalar_lea.vmem %s6, %s354
        $region48: #{tpu_custom_call.1} parent=19 // pred_fallthru
          _
        // Predicated region
        $region49: #{tpu_custom_call.1} parent=19 // pred_check
          %p356 = pneg %p232
        $region50: #{tpu_custom_call.1} parent=19 // pred_check_branch
          %358 = sbr.rel (%p356) target = $region52
        $region51: #{tpu_custom_call.1} parent=19 // pred_region
          %p359 = scmp.lt.s32.totalorder %s26, 3
          %s360 = scalar_select %p359, %s26, 3
          %s361 = smul.addr %s360, 8
          %s362 = scalar_lea.vmem %s7, %s361
        $region52: #{tpu_custom_call.1} parent=19 // pred_fallthru
          _
      $region20: #{tpu_custom_call.1} parent=5 // pred_fallthru
        _
      %p363 = scmp.le.s32.totalorder 1, %s18
      %p364 = scmp.lt.s32.totalorder %s18, 9
      %p365 = pnand %p363, %p364
      %p366 = pneg %p365
      // Predicated region
      $region53: #{tpu_custom_call.1} parent=5 // pred_check
        _
      $region54: #{tpu_custom_call.1} parent=5 // pred_check_branch
        %368 = sbr.rel (%p365) target = $region56
      $region55: #{tpu_custom_call.1} parent=5 // pred_region
        %s369 = ssub.s32 %s18, 1
        %p370 = scmp.lt.s32.totalorder %s27, 1
        %s371 = scalar_select %p370, %s27, 1
        %s372 = smul.addr %s371, 8
        %s373 = scalar_lea.vmem %s0, %s372
        %p374 = pneg %p56
        %p375 = pneg %p53
        %p376 = scmp.lt.s32.totalorder %s28, 3
        %s377 = scalar_select %p376, %s28, 3
        %s378 = smul.addr %s377, 4
        %s379 = smul.addr %s378, 8
        %s380 = scalar_lea.vmem %s1, %s379
        %p381 = pneg %p82
        %p382 = pneg %p79
        %p383 = scmp.lt.s32.totalorder %s28, 3
        %s384 = scalar_select %p383, %s28, 3
        %s385 = smul.addr %s384, 4
        %s386 = smul.addr %s385, 8
        %s387 = scalar_lea.vmem %s2, %s386
        %p388 = pneg %p108
        %p389 = pneg %p105
        %p390 = scmp.lt.s32.totalorder %s28, 3
        %s391 = scalar_select %p390, %s28, 3
        %s392 = smul.addr %s391, 4
        %s393 = smul.addr %s392, 8
        %s394 = scalar_lea.vmem %s3, %s393
        %p395 = pneg %p134
        %p396 = pneg %p131
        %p397 = scmp.lt.s32.totalorder %s28, 3
        %s398 = scalar_select %p397, %s28, 3
        %s399 = scalar_lea.vmem %s4, %s398
        %p400 = pneg %p160
        %p401 = pneg %p157
        %p402 = scmp.lt.s32.totalorder %s28, 3
        %s403 = scalar_select %p402, %s28, 3
        %s404 = scalar_lea.vmem %s5, %s403
        %p405 = pneg %p186
        %p406 = pneg %p183
        %p407 = scmp.lt.s32.totalorder %s28, 3
        %s408 = scalar_select %p407, %s28, 3
        %s409 = scalar_lea.vmem %s6, %s408
        %p410 = pneg %p212
        %p411 = pneg %p209
        %p412 = scmp.lt.s32.totalorder %s28, 3
        %s413 = scalar_select %p412, %s28, 3
        %s414 = smul.addr %s413, 8
        %s415 = scalar_lea.vmem %s7, %s414
        %p416 = pneg %p238
        %p417 = pneg %p235
        %p418 = pneg %p259
        %p419 = pneg %p256
        %p420 = pneg %p285
        %p421 = pneg %p282
        %s422 = sand.u32 %s272, 1
        %s423 = scalar_lea.sflag [#allocation4], %s422
        %s424 = sand.u32 %s272, 1
        %s425 = smul.addr %s424, 8
        %s426 = scalar_lea.vmem [#allocation3], %s425
        %p427 = scmp.lt.s32.totalorder %s27, 1
        %s428 = scalar_select %p427, %s27, 1
        %s429 = smul.addr %s428, 8
        %s430 = scalar_lea.vmem %s0, %s429
        %p431 = scmp.lt.s32.totalorder %s28, 3
        %s432 = scalar_select %p431, %s28, 3
        %s433 = smul.addr %s432, 4
        %s434 = smul.addr %s433, 8
        %s435 = scalar_lea.vmem %s1, %s434
        %p436 = scmp.lt.s32.totalorder %s28, 3
        %s437 = scalar_select %p436, %s28, 3
        %s438 = smul.addr %s437, 4
        %s439 = smul.addr %s438, 8
        %s440 = scalar_lea.vmem %s2, %s439
        %p441 = scmp.lt.s32.totalorder %s28, 3
        %s442 = scalar_select %p441, %s28, 3
        %s443 = smul.addr %s442, 4
        %s444 = smul.addr %s443, 8
        %s445 = scalar_lea.vmem %s3, %s444
        %p446 = scmp.lt.s32.totalorder %s28, 3
        %s447 = scalar_select %p446, %s28, 3
        %s448 = scalar_lea.vmem %s4, %s447
        %p449 = scmp.lt.s32.totalorder %s28, 3
        %s450 = scalar_select %p449, %s28, 3
        %s451 = scalar_lea.vmem %s5, %s450
        %p452 = scmp.lt.s32.totalorder %s28, 3
        %s453 = scalar_select %p452, %s28, 3
        %s454 = scalar_lea.vmem %s6, %s453
        %p455 = scmp.lt.s32.totalorder %s28, 3
        %s456 = scalar_select %p455, %s28, 3
        %s457 = smul.addr %s456, 8
        %s458 = scalar_lea.vmem %s7, %s457
        %p459 = scmp.eq.s32.totalorder %s28, 0
        // Predicated region
        $region57: #{tpu_custom_call.1} parent=55 // pred_check
          %p460 = pneg %p459
        $region58: #{tpu_custom_call.1} parent=55 // pred_check_branch
          %462 = sbr.rel (%p460) target = $region60
        $region59: #{tpu_custom_call.1} parent=55 // pred_region
          %vm463 = vcmask 261120
          %464 = vst.msk [vmem:[#allocation2] sm:$0xff] %vm463, 0.0
        $region60: #{tpu_custom_call.1} parent=55 // pred_fallthru
          _
        %v465 = vld [vmem:[%s430] sm:$0xff]
        %v466 = vld [vmem:[%s435] sm:$0xff]
        %v467 = vld [vmem:[%s435 + $0x8] sm:$0xff]
        %v468 = vld [vmem:[%s435 + $0x10] sm:$0xff]
        %v469 = vld [vmem:[%s435 + $0x18] sm:$0xff]
        %v470 = vld [vmem:[%s448] sm:$0x1]
        %v472 = vlaneseq
        %v473 = vshrl.u32 %v472, 7
        %v474 = vsub.s32 0, %v473
        %v475 = vrot.slane %v470, %v474
        %vm477 = vcmask 261120
        %v479 = vsel %vm477, %v465, 0
        %481 = vmatprep.subr.mxu0 0.0
        %482 = vmatpush1.msra.mxu0 %v466
        %483 = vmatprep.subr.mxu0 0.0
        %484 = vmatpush1.msra.mxu0 %v467
        %485 = vmatprep.subr.mxu0 0.0
        %486 = vmatpush1.msra.mxu0 %v468
        %487 = vmatprep.subr.mxu0 0.0
        %488 = vmatpush1.msra.mxu0 %v469
        %489 = vmatprep.subr.mxu0 0.0
        %490 = vmatpush1.msra.mxu0 0.0
        %491 = vmatprep.subr.mxu0 0.0
        %492 = vmatpush1.msra.mxu0 0.0
        %493 = vmatprep.subr.mxu0 0.0
        %494 = vmatpush1.msra.mxu0 0.0
        %495 = vmatprep.subr.mxu0 0.0
        %496 = vmatpush1.msra.mxu0 0.0
        %497 = vmatprep.subr.mxu0 0.0
        %498 = vmatpush1.msra.mxu0 0.0
        %499 = vmatprep.subr.mxu0 0.0
        %500 = vmatpush1.msra.mxu0 0.0
        %501 = vmatprep.subr.mxu0 0.0
        %502 = vmatpush1.msra.mxu0 0.0
        %503 = vmatprep.subr.mxu0 0.0
        %504 = vmatpush1.msra.mxu0 0.0
        %505 = vmatprep.subr.mxu0 0.0
        %506 = vmatpush1.msra.mxu0 0.0
        %507 = vmatprep.subr.mxu0 0.0
        %508 = vmatpush1.msra.mxu0 0.0
        %509 = vmatprep.subr.mxu0 0.0
        %510 = vmatpush1.msra.mxu0 0.0
        %511 = vmatprep.subr.mxu0 0.0
        %512 = vmatpush1.msra.mxu0 0.0
        %513 = vmatprep.subr.mxu0 0.0
        %514 = vmatpush1.msra.mxu0 0.0
        %515 = vmatprep.subr.mxu0 0.0
        %516 = vmatpush1.msra.mxu0 0.0
        %517 = vmatprep.subr.mxu0 0.0
        %518 = vmatpush1.msra.mxu0 0.0
        %519 = vmatprep.subr.mxu0 0.0
        %520 = vmatpush1.msra.mxu0 0.0
        %521 = vmatprep.subr.mxu0 0.0
        %522 = vmatpush1.msra.mxu0 0.0
        %523 = vmatprep.subr.mxu0 0.0
        %524 = vmatpush1.msra.mxu0 0.0
        %525 = vmatprep.subr.mxu0 0.0
        %526 = vmatpush1.msra.mxu0 0.0
        %527 = vmatprep.subr.mxu0 0.0
        %528 = vmatpush1.msra.mxu0 0.0
        %529 = vmatprep.subr.mxu0 0.0
        %530 = vmatpush1.msra.mxu0 0.0
        %531 = vmatprep.subr.mxu0 0.0
        %532 = vmatpush1.msra.mxu0 0.0
        %533 = vmatprep.subr.mxu0 0.0
        %534 = vmatpush1.msra.mxu0 0.0
        %535 = vmatprep.subr.mxu0 0.0
        %536 = vmatpush1.msra.mxu0 0.0
        %537 = vmatprep.subr.mxu0 0.0
        %538 = vmatpush1.msra.mxu0 0.0
        %539 = vmatprep.subr.mxu0 0.0
        %540 = vmatpush1.msra.mxu0 0.0
        %541 = vmatprep.subr.mxu0 0.0
        %542 = vmatpush1.msra.mxu0 0.0
        %543 = vmatprep.subr.mxu0 0.0
        %544 = vmatpush1.msra.mxu0 0.0
        %545 = vmatprep.mubr.f32.mxu0 0.0
        %546 = vmatmul.mubr.f32.gmra.mrb[0].mxu0 %v479
        %v547 = vpop.f32.mrb[0].mxu0
        %v548 = vadd.f32 %v475, %v547
        %v549 = vpop.f32.mrb[0].mxu0
        %550 = vdwg.mxu0
        %v551 = vmul.f32 %v548, 0.35355338
        %v552 = vld [vmem:[%s440] sm:$0xff]
        %v553 = vld [vmem:[%s440 + $0x8] sm:$0xff]
        %v554 = vld [vmem:[%s440 + $0x10] sm:$0xff]
        %v555 = vld [vmem:[%s440 + $0x18] sm:$0xff]
        %v556 = vld [vmem:[%s451] sm:$0x1]
        %v558 = vlaneseq
        %v559 = vshrl.u32 %v558, 7
        %v560 = vsub.s32 0, %v559
        %v561 = vrot.slane %v556, %v560
        %563 = vmatprep.subr.mxu0 0.0
        %564 = vmatpush1.msra.mxu0 %v552
        %565 = vmatprep.subr.mxu0 0.0
        %566 = vmatpush1.msra.mxu0 %v553
        %567 = vmatprep.subr.mxu0 0.0
        %568 = vmatpush1.msra.mxu0 %v554
        %569 = vmatprep.subr.mxu0 0.0
        %570 = vmatpush1.msra.mxu0 %v555
        %571 = vmatprep.subr.mxu0 0.0
        %572 = vmatpush1.msra.mxu0 0.0
        %573 = vmatprep.subr.mxu0 0.0
        %574 = vmatpush1.msra.mxu0 0.0
        %575 = vmatprep.subr.mxu0 0.0
        %576 = vmatpush1.msra.mxu0 0.0
        %577 = vmatprep.subr.mxu0 0.0
        %578 = vmatpush1.msra.mxu0 0.0
        %579 = vmatprep.subr.mxu0 0.0
        %580 = vmatpush1.msra.mxu0 0.0
        %581 = vmatprep.subr.mxu0 0.0
        %582 = vmatpush1.msra.mxu0 0.0
        %583 = vmatprep.subr.mxu0 0.0
        %584 = vmatpush1.msra.mxu0 0.0
        %585 = vmatprep.subr.mxu0 0.0
        %586 = vmatpush1.msra.mxu0 0.0
        %587 = vmatprep.subr.mxu0 0.0
        %588 = vmatpush1.msra.mxu0 0.0
        %589 = vmatprep.subr.mxu0 0.0
        %590 = vmatpush1.msra.mxu0 0.0
        %591 = vmatprep.subr.mxu0 0.0
        %592 = vmatpush1.msra.mxu0 0.0
        %593 = vmatprep.subr.mxu0 0.0
        %594 = vmatpush1.msra.mxu0 0.0
        %595 = vmatprep.subr.mxu0 0.0
        %596 = vmatpush1.msra.mxu0 0.0
        %597 = vmatprep.subr.mxu0 0.0
        %598 = vmatpush1.msra.mxu0 0.0
        %599 = vmatprep.subr.mxu0 0.0
        %600 = vmatpush1.msra.mxu0 0.0
        %601 = vmatprep.subr.mxu0 0.0
        %602 = vmatpush1.msra.mxu0 0.0
        %603 = vmatprep.subr.mxu0 0.0
        %604 = vmatpush1.msra.mxu0 0.0
        %605 = vmatprep.subr.mxu0 0.0
        %606 = vmatpush1.msra.mxu0 0.0
        %607 = vmatprep.subr.mxu0 0.0
        %608 = vmatpush1.msra.mxu0 0.0
        %609 = vmatprep.subr.mxu0 0.0
        %610 = vmatpush1.msra.mxu0 0.0
        %611 = vmatprep.subr.mxu0 0.0
        %612 = vmatpush1.msra.mxu0 0.0
        %613 = vmatprep.subr.mxu0 0.0
        %614 = vmatpush1.msra.mxu0 0.0
        %615 = vmatprep.subr.mxu0 0.0
        %616 = vmatpush1.msra.mxu0 0.0
        %617 = vmatprep.subr.mxu0 0.0
        %618 = vmatpush1.msra.mxu0 0.0
        %619 = vmatprep.subr.mxu0 0.0
        %620 = vmatpush1.msra.mxu0 0.0
        %621 = vmatprep.subr.mxu0 0.0
        %622 = vmatpush1.msra.mxu0 0.0
        %623 = vmatprep.subr.mxu0 0.0
        %624 = vmatpush1.msra.mxu0 0.0
        %625 = vmatprep.subr.mxu0 0.0
        %626 = vmatpush1.msra.mxu0 0.0
        %627 = vmatprep.mubr.f32.mxu0 0.0
        %628 = vmatmul.mubr.f32.gmra.mrb[0].mxu0 %v479
        %v629 = vpop.f32.mrb[0].mxu0
        %v630 = vadd.f32 %v561, %v629
        %v631 = vpop.f32.mrb[0].mxu0
        %632 = vdwg.mxu0
        %v633 = vld [vmem:[%s445] sm:$0xff]
        %v634 = vld [vmem:[%s445 + $0x8] sm:$0xff]
        %v635 = vld [vmem:[%s445 + $0x10] sm:$0xff]
        %v636 = vld [vmem:[%s445 + $0x18] sm:$0xff]
        %v637 = vld [vmem:[%s454] sm:$0x1]
        %v639 = vlaneseq
        %v640 = vshrl.u32 %v639, 7
        %v641 = vsub.s32 0, %v640
        %v642 = vrot.slane %v637, %v641
        %644 = vmatprep.subr.mxu0 0.0
        %645 = vmatpush1.msra.mxu0 %v633
        %646 = vmatprep.subr.mxu0 0.0
        %647 = vmatpush1.msra.mxu0 %v634
        %648 = vmatprep.subr.mxu0 0.0
        %649 = vmatpush1.msra.mxu0 %v635
        %650 = vmatprep.subr.mxu0 0.0
        %651 = vmatpush1.msra.mxu0 %v636
        %652 = vmatprep.subr.mxu0 0.0
        %653 = vmatpush1.msra.mxu0 0.0
        %654 = vmatprep.subr.mxu0 0.0
        %655 = vmatpush1.msra.mxu0 0.0
        %656 = vmatprep.subr.mxu0 0.0
        %657 = vmatpush1.msra.mxu0 0.0
        %658 = vmatprep.subr.mxu0 0.0
        %659 = vmatpush1.msra.mxu0 0.0
        %660 = vmatprep.subr.mxu0 0.0
        %661 = vmatpush1.msra.mxu0 0.0
        %662 = vmatprep.subr.mxu0 0.0
        %663 = vmatpush1.msra.mxu0 0.0
        %664 = vmatprep.subr.mxu0 0.0
        %665 = vmatpush1.msra.mxu0 0.0
        %666 = vmatprep.subr.mxu0 0.0
        %667 = vmatpush1.msra.mxu0 0.0
        %668 = vmatprep.subr.mxu0 0.0
        %669 = vmatpush1.msra.mxu0 0.0
        %670 = vmatprep.subr.mxu0 0.0
        %671 = vmatpush1.msra.mxu0 0.0
        %672 = vmatprep.subr.mxu0 0.0
        %673 = vmatpush1.msra.mxu0 0.0
        %674 = vmatprep.subr.mxu0 0.0
        %675 = vmatpush1.msra.mxu0 0.0
        %676 = vmatprep.subr.mxu0 0.0
        %677 = vmatpush1.msra.mxu0 0.0
        %678 = vmatprep.subr.mxu0 0.0
        %679 = vmatpush1.msra.mxu0 0.0
        %680 = vmatprep.subr.mxu0 0.0
        %681 = vmatpush1.msra.mxu0 0.0
        %682 = vmatprep.subr.mxu0 0.0
        %683 = vmatpush1.msra.mxu0 0.0
        %684 = vmatprep.subr.mxu0 0.0
        %685 = vmatpush1.msra.mxu0 0.0
        %686 = vmatprep.subr.mxu0 0.0
        %687 = vmatpush1.msra.mxu0 0.0
        %688 = vmatprep.subr.mxu0 0.0
        %689 = vmatpush1.msra.mxu0 0.0
        %690 = vmatprep.subr.mxu0 0.0
        %691 = vmatpush1.msra.mxu0 0.0
        %692 = vmatprep.subr.mxu0 0.0
        %693 = vmatpush1.msra.mxu0 0.0
        %694 = vmatprep.subr.mxu0 0.0
        %695 = vmatpush1.msra.mxu0 0.0
        %696 = vmatprep.subr.mxu0 0.0
        %697 = vmatpush1.msra.mxu0 0.0
        %698 = vmatprep.subr.mxu0 0.0
        %699 = vmatpush1.msra.mxu0 0.0
        %700 = vmatprep.subr.mxu0 0.0
        %701 = vmatpush1.msra.mxu0 0.0
        %702 = vmatprep.subr.mxu0 0.0
        %703 = vmatpush1.msra.mxu0 0.0
        %704 = vmatprep.subr.mxu0 0.0
        %705 = vmatpush1.msra.mxu0 0.0
        %706 = vmatprep.subr.mxu0 0.0
        %707 = vmatpush1.msra.mxu0 0.0
        %708 = vmatprep.mubr.f32.mxu0 0.0
        %709 = vmatmul.mubr.f32.gmra.mrb[0].mxu0 %v479
        %v710 = vpop.f32.mrb[0].mxu0
        %v711 = vadd.f32 %v642, %v710
        %v712 = vpop.f32.mrb[0].mxu0
        %713 = vdwg.mxu0
        %vm714 = vcmask 64512
        %v716 = vsel %vm714, %v551, 0
        %v719 = vsel %vm714, %v630, 0
        %721 = vmatprep.subr.mxu0 0.0
        %722 = vmatpush1.xpose.msra.mxu0 %v719
        %723 = vmatprep.subr.mxu0 0.0
        %724 = vmatpush1.xpose.msra.mxu0 0.0
        %725 = vmatprep.subr.mxu0 0.0
        %726 = vmatpush1.xpose.msra.mxu0 0.0
        %727 = vmatprep.subr.mxu0 0.0
        %728 = vmatpush1.xpose.msra.mxu0 0.0
        %729 = vmatprep.subr.mxu0 0.0
        %730 = vmatpush1.xpose.msra.mxu0 0.0
        %731 = vmatprep.subr.mxu0 0.0
        %732 = vmatpush1.xpose.msra.mxu0 0.0
        %733 = vmatprep.subr.mxu0 0.0
        %734 = vmatpush1.xpose.msra.mxu0 0.0
        %735 = vmatprep.subr.mxu0 0.0
        %736 = vmatpush1.xpose.msra.mxu0 0.0
        %737 = vmatprep.subr.mxu0 0.0
        %738 = vmatpush1.xpose.msra.mxu0 0.0
        %739 = vmatprep.subr.mxu0 0.0
        %740 = vmatpush1.xpose.msra.mxu0 0.0
        %741 = vmatprep.subr.mxu0 0.0
        %742 = vmatpush1.xpose.msra.mxu0 0.0
        %743 = vmatprep.subr.mxu0 0.0
        %744 = vmatpush1.xpose.msra.mxu0 0.0
        %745 = vmatprep.subr.mxu0 0.0
        %746 = vmatpush1.xpose.msra.mxu0 0.0
        %747 = vmatprep.subr.mxu0 0.0
        %748 = vmatpush1.xpose.msra.mxu0 0.0
        %749 = vmatprep.subr.mxu0 0.0
        %750 = vmatpush1.xpose.msra.mxu0 0.0
        %751 = vmatprep.subr.mxu0 0.0
        %752 = vmatpush1.xpose.msra.mxu0 0.0
        %753 = vmatprep.subr.mxu0 0.0
        %754 = vmatpush1.xpose.msra.mxu0 0.0
        %755 = vmatprep.subr.mxu0 0.0
        %756 = vmatpush1.xpose.msra.mxu0 0.0
        %757 = vmatprep.subr.mxu0 0.0
        %758 = vmatpush1.xpose.msra.mxu0 0.0
        %759 = vmatprep.subr.mxu0 0.0
        %760 = vmatpush1.xpose.msra.mxu0 0.0
        %761 = vmatprep.subr.mxu0 0.0
        %762 = vmatpush1.xpose.msra.mxu0 0.0
        %763 = vmatprep.subr.mxu0 0.0
        %764 = vmatpush1.xpose.msra.mxu0 0.0
        %765 = vmatprep.subr.mxu0 0.0
        %766 = vmatpush1.xpose.msra.mxu0 0.0
        %767 = vmatprep.subr.mxu0 0.0
        %768 = vmatpush1.xpose.msra.mxu0 0.0
        %769 = vmatprep.subr.mxu0 0.0
        %770 = vmatpush1.xpose.msra.mxu0 0.0
        %771 = vmatprep.subr.mxu0 0.0
        %772 = vmatpush1.xpose.msra.mxu0 0.0
        %773 = vmatprep.subr.mxu0 0.0
        %774 = vmatpush1.xpose.msra.mxu0 0.0
        %775 = vmatprep.subr.mxu0 0.0
        %776 = vmatpush1.xpose.msra.mxu0 0.0
        %777 = vmatprep.subr.mxu0 0.0
        %778 = vmatpush1.xpose.msra.mxu0 0.0
        %779 = vmatprep.subr.mxu0 0.0
        %780 = vmatpush1.xpose.msra.mxu0 0.0
        %781 = vmatprep.subr.mxu0 0.0
        %782 = vmatpush1.xpose.msra.mxu0 0.0
        %783 = vmatprep.subr.mxu0 0.0
        %784 = vmatpush1.xpose.msra.mxu0 0.0
        %785 = vmatprep.mubr.f32.mxu0 0.0
        %786 = vmatmul.mubr.f32.gmra.mrb[0].mxu0 %v716
        %v787 = vpop.f32.mrb[0].mxu0
        %v788 = vadd.f32 0.0, %v787
        %v789 = vpop.f32.mrb[0].mxu0
        %790 = vdwg.mxu0
        %v791 = vlaneseq
        %v792 = vshrl.u32 %v791, 7
        %v793 = vlaneseq
        %v794 = vand.u32 %v793, 127
        %vm795 = vcmp.le.s32.totalorder %v794, %v792
        %v796 = vsel %vm795, %v788, -10000.0
        %v797 = vsel %vm714, %v796, -inf
        %798 = vmax.xlane.f32.xlu0 %v797
        %v799 = vpop.xlane.xlu0 %798
        %v800 = vsub.f32 %v796, %v799
        %v801 = vmul.f32 %v800, 1.442695
        %v802 = vpow.pop %v801
        %v803 = vsel %vm714, %v802, 0.0
        %804 = vadd.xlane.f32.xlu0 %v803
        %v805 = vpop.xlane.xlu0 %804
        %v806 = vrcp.pop %v805
        %v807 = vmul.f32 %v802, %v806
        %v809 = vsel %vm714, %v807, 0
        %811 = vmatprep.subr.mxu0 0.0
        %812 = vmatpush1.msra.mxu0 %v711
        %813 = vmatprep.subr.mxu0 0.0
        %814 = vmatpush1.msra.mxu0 0.0
        %815 = vmatprep.subr.mxu0 0.0
        %816 = vmatpush1.msra.mxu0 0.0
        %817 = vmatprep.subr.mxu0 0.0
        %818 = vmatpush1.msra.mxu0 0.0
        %819 = vmatprep.subr.mxu0 0.0
        %820 = vmatpush1.msra.mxu0 0.0
        %821 = vmatprep.subr.mxu0 0.0
        %822 = vmatpush1.msra.mxu0 0.0
        %823 = vmatprep.subr.mxu0 0.0
        %824 = vmatpush1.msra.mxu0 0.0
        %825 = vmatprep.subr.mxu0 0.0
        %826 = vmatpush1.msra.mxu0 0.0
        %827 = vmatprep.subr.mxu0 0.0
        %828 = vmatpush1.msra.mxu0 0.0
        %829 = vmatprep.subr.mxu0 0.0
        %830 = vmatpush1.msra.mxu0 0.0
        %831 = vmatprep.subr.mxu0 0.0
        %832 = vmatpush1.msra.mxu0 0.0
        %833 = vmatprep.subr.mxu0 0.0
        %834 = vmatpush1.msra.mxu0 0.0
        %835 = vmatprep.subr.mxu0 0.0
        %836 = vmatpush1.msra.mxu0 0.0
        %837 = vmatprep.subr.mxu0 0.0
        %838 = vmatpush1.msra.mxu0 0.0
        %839 = vmatprep.subr.mxu0 0.0
        %840 = vmatpush1.msra.mxu0 0.0
        %841 = vmatprep.subr.mxu0 0.0
        %842 = vmatpush1.msra.mxu0 0.0
        %843 = vmatprep.subr.mxu0 0.0
        %844 = vmatpush1.msra.mxu0 0.0
        %845 = vmatprep.subr.mxu0 0.0
        %846 = vmatpush1.msra.mxu0 0.0
        %847 = vmatprep.subr.mxu0 0.0
        %848 = vmatpush1.msra.mxu0 0.0
        %849 = vmatprep.subr.mxu0 0.0
        %850 = vmatpush1.msra.mxu0 0.0
        %851 = vmatprep.subr.mxu0 0.0
        %852 = vmatpush1.msra.mxu0 0.0
        %853 = vmatprep.subr.mxu0 0.0
        %854 = vmatpush1.msra.mxu0 0.0
        %855 = vmatprep.subr.mxu0 0.0
        %856 = vmatpush1.msra.mxu0 0.0
        %857 = vmatprep.subr.mxu0 0.0
        %858 = vmatpush1.msra.mxu0 0.0
        %859 = vmatprep.subr.mxu0 0.0
        %860 = vmatpush1.msra.mxu0 0.0
        %861 = vmatprep.subr.mxu0 0.0
        %862 = vmatpush1.msra.mxu0 0.0
        %863 = vmatprep.subr.mxu0 0.0
        %864 = vmatpush1.msra.mxu0 0.0
        %865 = vmatprep.subr.mxu0 0.0
        %866 = vmatpush1.msra.mxu0 0.0
        %867 = vmatprep.subr.mxu0 0.0
        %868 = vmatpush1.msra.mxu0 0.0
        %869 = vmatprep.subr.mxu0 0.0
        %870 = vmatpush1.msra.mxu0 0.0
        %871 = vmatprep.subr.mxu0 0.0
        %872 = vmatpush1.msra.mxu0 0.0
        %873 = vmatprep.subr.mxu0 0.0
        %874 = vmatpush1.msra.mxu0 0.0
        %875 = vmatprep.mubr.f32.mxu0 0.0
        %876 = vmatmul.mubr.f32.gmra.mrb[0].mxu0 %v809
        %v877 = vpop.f32.mrb[0].mxu0
        %v878 = vadd.f32 0.0, %v877
        %v879 = vpop.f32.mrb[0].mxu0
        %880 = vdwg.mxu0
        %v881 = vld [vmem:[#allocation2] sm:$0xff]
        %v882 = vld [vmem:[%s458] sm:$0xff]
        %v884 = vsel %vm714, %v878, 0
        %886 = vmatprep.subr.mxu0 0.0
        %887 = vmatpush1.msra.mxu0 %v882
        %888 = vmatprep.subr.mxu0 0.0
        %889 = vmatpush1.msra.mxu0 0.0
        %890 = vmatprep.subr.mxu0 0.0
        %891 = vmatpush1.msra.mxu0 0.0
        %892 = vmatprep.subr.mxu0 0.0
        %893 = vmatpush1.msra.mxu0 0.0
        %894 = vmatprep.subr.mxu0 0.0
        %895 = vmatpush1.msra.mxu0 0.0
        %896 = vmatprep.subr.mxu0 0.0
        %897 = vmatpush1.msra.mxu0 0.0
        %898 = vmatprep.subr.mxu0 0.0
        %899 = vmatpush1.msra.mxu0 0.0
        %900 = vmatprep.subr.mxu0 0.0
        %901 = vmatpush1.msra.mxu0 0.0
        %902 = vmatprep.subr.mxu0 0.0
        %903 = vmatpush1.msra.mxu0 0.0
        %904 = vmatprep.subr.mxu0 0.0
        %905 = vmatpush1.msra.mxu0 0.0
        %906 = vmatprep.subr.mxu0 0.0
        %907 = vmatpush1.msra.mxu0 0.0
        %908 = vmatprep.subr.mxu0 0.0
        %909 = vmatpush1.msra.mxu0 0.0
        %910 = vmatprep.subr.mxu0 0.0
        %911 = vmatpush1.msra.mxu0 0.0
        %912 = vmatprep.subr.mxu0 0.0
        %913 = vmatpush1.msra.mxu0 0.0
        %914 = vmatprep.subr.mxu0 0.0
        %915 = vmatpush1.msra.mxu0 0.0
        %916 = vmatprep.subr.mxu0 0.0
        %917 = vmatpush1.msra.mxu0 0.0
        %918 = vmatprep.subr.mxu0 0.0
        %919 = vmatpush1.msra.mxu0 0.0
        %920 = vmatprep.subr.mxu0 0.0
        %921 = vmatpush1.msra.mxu0 0.0
        %922 = vmatprep.subr.mxu0 0.0
        %923 = vmatpush1.msra.mxu0 0.0
        %924 = vmatprep.subr.mxu0 0.0
        %925 = vmatpush1.msra.mxu0 0.0
        %926 = vmatprep.subr.mxu0 0.0
        %927 = vmatpush1.msra.mxu0 0.0
        %928 = vmatprep.subr.mxu0 0.0
        %929 = vmatpush1.msra.mxu0 0.0
        %930 = vmatprep.subr.mxu0 0.0
        %931 = vmatpush1.msra.mxu0 0.0
        %932 = vmatprep.subr.mxu0 0.0
        %933 = vmatpush1.msra.mxu0 0.0
        %934 = vmatprep.subr.mxu0 0.0
        %935 = vmatpush1.msra.mxu0 0.0
        %936 = vmatprep.subr.mxu0 0.0
        %937 = vmatpush1.msra.mxu0 0.0
        %938 = vmatprep.subr.mxu0 0.0
        %939 = vmatpush1.msra.mxu0 0.0
        %940 = vmatprep.subr.mxu0 0.0
        %941 = vmatpush1.msra.mxu0 0.0
        %942 = vmatprep.subr.mxu0 0.0
        %943 = vmatpush1.msra.mxu0 0.0
        %944 = vmatprep.subr.mxu0 0.0
        %945 = vmatpush1.msra.mxu0 0.0
        %946 = vmatprep.subr.mxu0 0.0
        %947 = vmatpush1.msra.mxu0 0.0
        %948 = vmatprep.subr.mxu0 0.0
        %949 = vmatpush1.msra.mxu0 0.0
        %950 = vmatprep.mubr.f32.mxu0 0.0
        %951 = vmatmul.mubr.f32.gmra.mrb[0].mxu0 %v884
        %v952 = vpop.f32.mrb[0].mxu0
        %v953 = vadd.f32 0.0, %v952
        %v954 = vpop.f32.mrb[0].mxu0
        %955 = vdwg.mxu0
        %v956 = vadd.f32 %v881, %v953
        %957 = vst.msk [vmem:[#allocation2] sm:$0xff] %vm477, %v956
        %p958 = scmp.eq.s32.totalorder %s28, 3
        // Predicated region
        $region61: #{tpu_custom_call.1} parent=55 // pred_check
          %p959 = pneg %p958
        $region62: #{tpu_custom_call.1} parent=55 // pred_check_branch
          %961 = sbr.rel (%p959) target = $region64
        $region63: #{tpu_custom_call.1} parent=55 // pred_region
          %v962 = vld [vmem:[#allocation2] sm:$0xff]
          %v963 = vld [vmem:[%s8] sm:$0x1]
          %v965 = vlaneseq
          %v966 = vshrl.u32 %v965, 7
          %v967 = vsub.s32 0, %v966
          %v968 = vrot.slane %v963, %v967
          %v970 = vadd.f32 %v962, %v968
          %971 = vst.msk [vmem:[%s426] sm:$0xff] %vm477, %v970
        $region64: #{tpu_custom_call.1} parent=55 // pred_fallthru
          _
        %s972 = sand.u32 %s272, 1
        %s973 = scalar_lea.sflag [#allocation4], %s972
        %s974 = sand.u32 %s272, 1
        %s975 = smul.addr %s974, 8
        %s976 = scalar_lea.vmem [#allocation3], %s975
        // Predicated region
        $region65: #{tpu_custom_call.1} parent=55 // pred_check
          %p977 = pneg %p282
        $region66: #{tpu_custom_call.1} parent=55 // pred_check_branch
          %979 = sbr.rel (%p977) target = $region68
        $region67: #{tpu_custom_call.1} parent=55 // pred_region
          %s981 = ssub.s32 128, 128
          %982 = vsyncadd %s973, %s981
          %s983 = smul.addr %s27, 128
          %s984 = scalar_lea.hbm %s9, %s983
          %s986 = sshll.u32 %s976, 4
          %s987 = int_to_ptr.vmem [resolvable:$true] %s986
          %989 = dma.vmem_to_hbm [thread:$0]  %s987, 128, %s984, %s973
        $region68: #{tpu_custom_call.1} parent=55 // pred_fallthru
          _
      $region56: #{tpu_custom_call.1} parent=5 // pred_fallthru
        _
      %p990 = scmp.le.s32.totalorder 2, %s18
      // Predicated region
      $region69: #{tpu_custom_call.1} parent=5 // pred_check
        %p991 = pneg %p990
      $region70: #{tpu_custom_call.1} parent=5 // pred_check_branch
        %993 = sbr.rel (%p991) target = $region72
      $region71: #{tpu_custom_call.1} parent=5 // pred_region
        %s994 = ssub.s32 %s18, 2
        // Predicated region
        $region73: #{tpu_custom_call.1} parent=71 // pred_check
          %p995 = pneg %p288
        $region74: #{tpu_custom_call.1} parent=71 // pred_check_branch
          %997 = sbr.rel (%p995) target = $region76
        $region75: #{tpu_custom_call.1} parent=71 // pred_region
          %s998 = sand.u32 %s273, 1
          %s999 = scalar_lea.sflag [#allocation4], %s998
          %s1000 = sand.u32 %s273, 1
          %s1001 = smul.addr %s1000, 8
          %s1002 = scalar_lea.vmem [#allocation3], %s1001
          %1003 = dma.done %s999, 128
        $region76: #{tpu_custom_call.1} parent=71 // pred_fallthru
          _
      $region72: #{tpu_custom_call.1} parent=5 // pred_fallthru
        _
    $region6: #{tpu_custom_call.1} parent=1 // loop_footer
      %s22 = sadd.s32 1, %s18
    $region7: #{tpu_custom_call.1} parent=1 // loop_footer_branch
      %17 = sbr.rel target = $region3
    $region8: #{tpu_custom_call.1} parent=1 // loop_exit
      _
    %1004 = vsyncpa [#allocation4], 1
    %s1005 = scalar_lea.sflag [#allocation4], 1
    %1006 = vsyncpa %s1005, 1

</llo_original>
